<compile_context>
chip_gen: v7x
topology: tpu7x:2x2x1
jax: 0.10.0
libtpu: 0.0.40
codegen_flags: <defaults>
</compile_context>

<pallas_src>
import functools

import jax
import jax.numpy as jnp
from jax.experimental import pallas as pl
from jax.experimental.pallas import tpu as pltpu

IN_FEATURES = 16
OUT_FEATURES = 32
_PACK = 8                      # batch rows packed per matmul row
PK = _PACK * IN_FEATURES       # 128 -> lane-dense input tile
PN = _PACK * OUT_FEATURES      # 256 -> lane-dense output tile

_SINGLE_BLOCK_MAX = 1024       # packed rows: below this, one grid-free block
_BLOCK_CAP = 4096              # packed rows per grid step (~6 MiB x+out)


def linear_clamp_kernel(minmax_ref, x_ref, w_ref, b_ref, o_ref):
    # minmax_ref: SMEM (2,) f32 -> [min_value, max_value]
    # x_ref: (R, 128), w_ref: (128, 256), b_ref: (1, 256), o_ref: (R, 256)
    acc = jnp.dot(x_ref[...], w_ref[...], preferred_element_type=jnp.float32)
    acc = acc + b_ref[...]                       # broadcast bias over rows
    lo = minmax_ref[0]
    hi = minmax_ref[1]
    # clamp_min then clamp_max (matches torch: saturates to hi if lo > hi)
    o_ref[...] = jnp.minimum(jnp.maximum(acc, lo), hi).astype(o_ref.dtype)


def pack_params(w, b):
    """Precompute block-diagonal W (128,256) and tiled bias (1,256) once."""
    w = jnp.asarray(w, jnp.float32)
    b = jnp.asarray(b, jnp.float32)
    w_packed = jnp.kron(jnp.eye(_PACK, dtype=w.dtype), w)         # (128, 256)
    b_packed = jnp.tile(b.reshape(1, OUT_FEATURES), (1, _PACK))   # (1, 256)
    return w_packed, b_packed


def _round_up(v, m):
    return ((v + m - 1) // m) * m


@functools.partial(jax.jit, static_argnames=("block_rows",))
def model_forward(x, w_packed, b_packed, min_value, max_value, *,
                  block_rows=None):
    """Equivalent of: clamp_max(clamp_min(x @ W + b, min), max)."""
    B = x.shape[0]
    minmax = jnp.stack([jnp.asarray(min_value, jnp.float32).reshape(()),
                        jnp.asarray(max_value, jnp.float32).reshape(())])

    # Always take the lane-dense packed path: pad batch to a multiple of _PACK.
    Bp = _round_up(B, _PACK)
    if Bp != B:
        x = jnp.pad(x, ((0, Bp - B), (0, 0)))
    R = Bp // _PACK
    xp = x.reshape(R, PK)                      # contiguous row-major repack

    # Choose the packed-row block size.
    if block_rows is None:
        if R <= _SINGLE_BLOCK_MAX:
            br = R
        else:
            # >=2 grid steps (v7x: both TensorCores), capped for VMEM/pipeline.
            br = min(_BLOCK_CAP, _round_up(pl.cdiv(R, 2), 8))
    else:
        br = max(8, _round_up(int(block_rows), 8))   # sublane-aligned

    if R <= br:
        # Single block, no grid: everything resident in VMEM, one kernel body.
        out = pl.pallas_call(
            linear_clamp_kernel,
            out_shape=jax.ShapeDtypeStruct((R, PN), jnp.float32),
            in_specs=[
                pl.BlockSpec(memory_space=pltpu.SMEM),   # min/max scalars
                pl.BlockSpec(memory_space=pltpu.VMEM),   # x (whole)
                pl.BlockSpec(memory_space=pltpu.VMEM),   # W (whole)
                pl.BlockSpec(memory_space=pltpu.VMEM),   # bias (whole)
            ],
            out_specs=pl.BlockSpec(memory_space=pltpu.VMEM),
        )(minmax, xp, w_packed, b_packed)
    else:
        nb = pl.cdiv(R, br)
        Rp = nb * br
        if Rp != R:
            xp = jnp.pad(xp, ((0, Rp - R), (0, 0)))

        cp_kwargs = {"dimension_semantics": ("parallel",)}
        # Double-buffered x + out tiles, double-buffered resident W, bias.
        vmem_bytes = (2 * br * (PK + PN) + 2 * PK * PN + PN) * 4
        if vmem_bytes > (14 << 20):           # only needed for huge overrides
            cp_kwargs["vmem_limit_bytes"] = int(min(vmem_bytes + (4 << 20),
                                                    64 << 20))

        out = pl.pallas_call(
            linear_clamp_kernel,
            out_shape=jax.ShapeDtypeStruct((Rp, PN), jnp.float32),
            grid=(nb,),
            in_specs=[
                pl.BlockSpec(memory_space=pltpu.SMEM),        # min/max scalars
                pl.BlockSpec((br, PK), lambda i: (i, 0)),     # x row tile
                pl.BlockSpec((PK, PN), lambda i: (0, 0)),     # W resident
                pl.BlockSpec((1, PN), lambda i: (0, 0)),      # bias resident
            ],
            out_specs=pl.BlockSpec((br, PN), lambda i: (i, 0)),
            compiler_params=pltpu.CompilerParams(**cp_kwargs),
        )(minmax, xp, w_packed, b_packed)
        out = out[:R]

    out = out.reshape(Bp, OUT_FEATURES)        # exact inverse of the packing
    return out[:B] if Bp != B else out


if __name__ == "__main__":
    key = jax.random.PRNGKey(0)
    k_x, k_w, k_b, k_m0, k_m1, k_x7, k_xb, k_xg = jax.random.split(key, 8)

    w = jax.random.normal(k_w, (IN_FEATURES, OUT_FEATURES), jnp.float32) * 0.1
    b = jax.random.normal(k_b, (OUT_FEATURES,), jnp.float32) * 0.1
    m0 = jax.random.normal(k_m0, (), dtype=jnp.float32)
    m1 = jax.random.normal(k_m1, (), dtype=jnp.float32)
    lo, hi = jnp.minimum(m0, m1), jnp.maximum(m0, m1)   # well-ordered clamp

    # Hoisted: block-diag W / tiled bias built once, not per forward.
    w_packed, b_packed = pack_params(w, b)
    jax.block_until_ready((w_packed, b_packed))

    def _reference(x, lo_, hi_):
        return jnp.minimum(jnp.maximum(x @ w + b.reshape(1, -1), lo_), hi_)

    # 1) Spec shape: B=1 (single-block, grid-free, packed path with padding).
    x1 = jax.random.normal(k_x, (1, IN_FEATURES), dtype=jnp.float32)
    out1 = model_forward(x1, w_packed, b_packed, lo, hi)
    jax.block_until_ready(out1)
    assert out1.shape == (1, OUT_FEATURES)
    assert jnp.allclose(out1, _reference(x1, lo, hi), atol=1e-5)

    # 2) Swapped bounds (min > max) -> saturates to max, matching torch.
    out1s = model_forward(x1, w_packed, b_packed, hi, lo)
    jax.block_until_ready(out1s)
    assert jnp.allclose(out1s, _reference(x1, hi, lo), atol=1e-5)

    # 3) Batch not a multiple of _PACK -> padded, still lane-dense.
    x7 = jax.random.normal(k_x7, (7, IN_FEATURES), dtype=jnp.float32)
    out7 = model_forward(x7, w_packed, b_packed, lo, hi)
    jax.block_until_ready(out7)
    assert out7.shape == (7, OUT_FEATURES)
    assert jnp.allclose(out7, _reference(x7, lo, hi), atol=1e-5)

    # 4) Moderate batch: single-block packed path.
    xb = jax.random.normal(k_xb, (2048, IN_FEATURES), dtype=jnp.float32)
    outb = model_forward(xb, w_packed, b_packed, lo, hi)
    jax.block_until_ready(outb)
    assert outb.shape == (2048, OUT_FEATURES)
    assert jnp.allclose(outb, _reference(xb, lo, hi), atol=1e-4)

    # 5) Large batch: grid path with >=2 parallel steps (v7x dual-TC friendly).
    xg = jax.random.normal(k_xg, (20480, IN_FEATURES), dtype=jnp.float32)
    outg = model_forward(xg, w_packed, b_packed, lo, hi)
    jax.block_until_ready(outg)
    assert outg.shape == (20480, OUT_FEATURES)
    assert jnp.allclose(outg, _reference(xg, lo, hi), atol=1e-4)

    print("KERNEL_OK")
</pallas_src>

<mosaic_0001>
module attributes {stable_mosaic.version = 11 : i64} {
  func.func @linear_clamp_kernel(%arg0: memref<2xf32, #tpu.memory_space<smem>>, %arg1: memref<1x128xf32, #tpu.memory_space<vmem>>, %arg2: memref<128x256xf32, #tpu.memory_space<vmem>>, %arg3: memref<1x256xf32, #tpu.memory_space<vmem>>, %arg4: memref<1x256xf32, #tpu.memory_space<vmem>>) attributes {dimension_semantics = [], scalar_prefetch = 0 : i64, scratch_operands = 0 : i64, tpu.core_type = #tpu.core_type<tc>} {
    %c0 = arith.constant 0 : index
    %c0_0 = arith.constant 0 : index
    %0 = vector.load %arg1[%c0, %c0_0] : memref<1x128xf32, #tpu.memory_space<vmem>>, vector<1x128xf32>
    %c0_1 = arith.constant 0 : index
    %c0_2 = arith.constant 0 : index
    %1 = vector.load %arg2[%c0_1, %c0_2] : memref<128x256xf32, #tpu.memory_space<vmem>>, vector<128x256xf32>
    %cst = arith.constant dense<0.000000e+00> : vector<1x256xf32>
    %2 = tpu.matmul %0, %1, %cst {dimension_numbers = #tpu.dot_dimension_numbers<[1], [0], [0], [1], [0, 0, 1, 1], [], []>} : vector<1x128xf32>, vector<128x256xf32>, vector<1x256xf32> -> vector<1x256xf32>
    %c0_3 = arith.constant 0 : index
    %c0_4 = arith.constant 0 : index
    %3 = vector.load %arg3[%c0_3, %c0_4] : memref<1x256xf32, #tpu.memory_space<vmem>>, vector<1x256xf32>
    %4 = arith.addf %2, %3 : vector<1x256xf32>
    %c0_5 = arith.constant 0 : index
    %5 = memref.load %arg0[%c0_5] : memref<2xf32, #tpu.memory_space<smem>>
    %c1 = arith.constant 1 : index
    %6 = memref.load %arg0[%c1] : memref<2xf32, #tpu.memory_space<smem>>
    %7 = vector.broadcast %5 : f32 to vector<1x256xf32>
    %8 = arith.maximumf %4, %7 : vector<1x256xf32>
    %9 = vector.broadcast %6 : f32 to vector<1x256xf32>
    %10 = arith.minimumf %8, %9 : vector<1x256xf32>
    %c0_6 = arith.constant 0 : index
    %c0_7 = arith.constant 0 : index
    %11 = vector.load %arg4[%c0_6, %c0_7] : memref<1x256xf32, #tpu.memory_space<vmem>>, vector<1x256xf32>
    tpu.vector_store %arg4[%c0_6, %c0_7], %10 {strides = array<i32>} : memref<1x256xf32, #tpu.memory_space<vmem>>, vector<1x256xf32>,
    return
  }
}

</mosaic_0001>

<llo_original>
// kernel: model_forward.1
$region0: #{model_forward.1}
  #allocation0 [shape = 'u32[]', space=smem, size = 0x4, offset = 0x4, fixed_abs, tag = 'smem constant byte address 0x4 - core index']
  #allocation1 [shape = 'u32[144,128]{1,0:T(1,128)}', space=vmem, size = 0x12000, scoped, tag = 'internal scratch']
  %s0 = inlined_call_operand.vmem [shape: f32[2], index: 0, kind: input, shape index: {}]
  %s1 = inlined_call_operand.vmem [shape: f32[1,128], index: 1, kind: input, shape index: {}]
  %s2 = inlined_call_operand.hbm [shape: f32[128,256], index: 2, kind: input, shape index: {}]
  %s3 = inlined_call_operand.vmem [shape: f32[1,256], index: 3, kind: input, shape index: {}]
  %s4 = inlined_call_operand.vmem [shape: f32[1,256], index: 4, kind: output, shape index: {}]
  %s5 = sld [smem:[#allocation0]]
  $region34: #{model_forward.1} parent=0
    _
  %s7 = ssub.s32 1, %s5
  %s8 = scalar_select 0, %s7, %s5
  $region1: #{model_forward.1} parent=0
    #allocation2 [shape = 'u8[512]{0}', space=smem, size = 0x200, scoped, tag = 'input window, operand 0, single buffered']
    #allocation3 [shape = 's32[1]{0}', space=sflag, size = 0x4, scoped, tag = 'scoped memory for model_forward.1']
    #allocation4 [shape = 's32[1]{0}', space=sflag, size = 0x4, scoped, tag = 'scoped memory for model_forward.1']
    #allocation5 [shape = 'u8[131072]{0}', space=vmem, size = 0x20000, scoped, tag = 'input window, operand 2, single buffered']
    %9 = vsyncpa [#allocation4], 0
    %10 = vsyncpa [#allocation3], 0
    // Predicated region
    $region2: #{model_forward.1} parent=1 // pred_check
      _
    $region3: #{model_forward.1} parent=1 // pred_check_branch
      %12 = sbr.rel (0) target = $region5
    $region4: #{model_forward.1} parent=1 // pred_region
      %s14 = ssub.s32 16, 16
      %15 = vsyncadd [#allocation4], %s14
      %s17 = sshll.u32 %s0, 4
      %s18 = int_to_ptr.vmem [resolvable:$true] %s17
      %20 = dma.vmem_to_smem %s18, 16, [#allocation2], [#allocation4]
    $region5: #{model_forward.1} parent=1 // pred_fallthru
      _
    // Predicated region
    $region6: #{model_forward.1} parent=1 // pred_check
      _
    $region7: #{model_forward.1} parent=1 // pred_check_branch
      %22 = sbr.rel (0) target = $region9
    $region8: #{model_forward.1} parent=1 // pred_region
      _
    $region9: #{model_forward.1} parent=1 // pred_fallthru
      _
    // Predicated region
    $region10: #{model_forward.1} parent=1 // pred_check
      _
    $region11: #{model_forward.1} parent=1 // pred_check_branch
      %24 = sbr.rel (0) target = $region13
    $region12: #{model_forward.1} parent=1 // pred_region
      %s26 = ssub.s32 4096, 4096
      %27 = vsyncadd [#allocation3], %s26
      %s28 = sshll.u32 [#allocation5], 4
      %s29 = int_to_ptr.vmem [resolvable:$true] %s28
      %34 = dma.hbm_to_vmem [thread:$0]  %s2, 4096, %s29, [#allocation3], 256, 256, 16
    $region13: #{model_forward.1} parent=1 // pred_fallthru
      _
    // Predicated region
    $region14: #{model_forward.1} parent=1 // pred_check
      _
    $region15: #{model_forward.1} parent=1 // pred_check_branch
      %36 = sbr.rel (0) target = $region17
    $region16: #{model_forward.1} parent=1 // pred_region
      _
    $region17: #{model_forward.1} parent=1 // pred_fallthru
      _
    // Predicated region
    $region18: #{model_forward.1} parent=1 // pred_check
      _
    $region19: #{model_forward.1} parent=1 // pred_check_branch
      %38 = sbr.rel (0) target = $region21
    $region20: #{model_forward.1} parent=1 // pred_region
      %39 = dma.done [#allocation4], 16
    $region21: #{model_forward.1} parent=1 // pred_fallthru
      _
    // Predicated region
    $region22: #{model_forward.1} parent=1 // pred_check
      _
    $region23: #{model_forward.1} parent=1 // pred_check_branch
      %41 = sbr.rel (0) target = $region25
    $region24: #{model_forward.1} parent=1 // pred_region
      %42 = dma.done [#allocation3], 4096
    $region25: #{model_forward.1} parent=1 // pred_fallthru
      _
    %43 = sfence
    %v44 = vld [vmem:[%s1] sm:$0x1]
    %v45 = vld [vmem:[#allocation5] sm:$0xff]
    %v46 = vld [vmem:[#allocation5 + $0x8] sm:$0xff]
    %v47 = vld [vmem:[#allocation5 + $0x10] sm:$0xff]
    %v48 = vld [vmem:[#allocation5 + $0x18] sm:$0xff]
    %v49 = vld [vmem:[#allocation5 + $0x20] sm:$0xff]
    %v50 = vld [vmem:[#allocation5 + $0x28] sm:$0xff]
    %v51 = vld [vmem:[#allocation5 + $0x30] sm:$0xff]
    %v52 = vld [vmem:[#allocation5 + $0x38] sm:$0xff]
    %v53 = vld [vmem:[#allocation5 + $0x40] sm:$0xff]
    %v54 = vld [vmem:[#allocation5 + $0x48] sm:$0xff]
    %v55 = vld [vmem:[#allocation5 + $0x50] sm:$0xff]
    %v56 = vld [vmem:[#allocation5 + $0x58] sm:$0xff]
    %v57 = vld [vmem:[#allocation5 + $0x60] sm:$0xff]
    %v58 = vld [vmem:[#allocation5 + $0x68] sm:$0xff]
    %v59 = vld [vmem:[#allocation5 + $0x70] sm:$0xff]
    %v60 = vld [vmem:[#allocation5 + $0x78] sm:$0xff]
    %v61 = vld [vmem:[#allocation5 + $0x80] sm:$0xff]
    %v62 = vld [vmem:[#allocation5 + $0x88] sm:$0xff]
    %v63 = vld [vmem:[#allocation5 + $0x90] sm:$0xff]
    %v64 = vld [vmem:[#allocation5 + $0x98] sm:$0xff]
    %v65 = vld [vmem:[#allocation5 + $0xa0] sm:$0xff]
    %v66 = vld [vmem:[#allocation5 + $0xa8] sm:$0xff]
    %v67 = vld [vmem:[#allocation5 + $0xb0] sm:$0xff]
    %v68 = vld [vmem:[#allocation5 + $0xb8] sm:$0xff]
    %v69 = vld [vmem:[#allocation5 + $0xc0] sm:$0xff]
    %v70 = vld [vmem:[#allocation5 + $0xc8] sm:$0xff]
    %v71 = vld [vmem:[#allocation5 + $0xd0] sm:$0xff]
    %v72 = vld [vmem:[#allocation5 + $0xd8] sm:$0xff]
    %v73 = vld [vmem:[#allocation5 + $0xe0] sm:$0xff]
    %v74 = vld [vmem:[#allocation5 + $0xe8] sm:$0xff]
    %v75 = vld [vmem:[#allocation5 + $0xf0] sm:$0xff]
    %v76 = vld [vmem:[#allocation5 + $0xf8] sm:$0xff]
    %v77 = vld [vmem:[%s3] sm:$0x3]
    %v79 = vlaneseq
    %v80 = vshrl.u32 %v79, 7
    %v81 = vsub.s32 0, %v80
    %v82 = vrot.slane %v77, %v81
    %v83 = vlaneseq
    %v84 = vshrl.u32 %v83, 7
    %v85 = vsub.s32 1, %v84
    %v86 = vrot.slane %v77, %v85
    %89 = vmatprep.subr.mxu0 %v46
    %90 = vmatpush1.msra.mxu0 %v45
    %91 = vmatprep.subr.mxu0 %v48
    %92 = vmatpush1.msra.mxu0 %v47
    %93 = vmatprep.subr.mxu0 %v50
    %94 = vmatpush1.msra.mxu0 %v49
    %95 = vmatprep.subr.mxu0 %v52
    %96 = vmatpush1.msra.mxu0 %v51
    %97 = vmatprep.subr.mxu0 %v54
    %98 = vmatpush1.msra.mxu0 %v53
    %99 = vmatprep.subr.mxu0 %v56
    %100 = vmatpush1.msra.mxu0 %v55
    %101 = vmatprep.subr.mxu0 %v58
    %102 = vmatpush1.msra.mxu0 %v57
    %103 = vmatprep.subr.mxu0 %v60
    %104 = vmatpush1.msra.mxu0 %v59
    %105 = vmatprep.subr.mxu0 %v62
    %106 = vmatpush1.msra.mxu0 %v61
    %107 = vmatprep.subr.mxu0 %v64
    %108 = vmatpush1.msra.mxu0 %v63
    %109 = vmatprep.subr.mxu0 %v66
    %110 = vmatpush1.msra.mxu0 %v65
    %111 = vmatprep.subr.mxu0 %v68
    %112 = vmatpush1.msra.mxu0 %v67
    %113 = vmatprep.subr.mxu0 %v70
    %114 = vmatpush1.msra.mxu0 %v69
    %115 = vmatprep.subr.mxu0 %v72
    %116 = vmatpush1.msra.mxu0 %v71
    %117 = vmatprep.subr.mxu0 %v74
    %118 = vmatpush1.msra.mxu0 %v73
    %119 = vmatprep.subr.mxu0 %v76
    %120 = vmatpush1.msra.mxu0 %v75
    %121 = vmatprep.subr.mxu0 0.0
    %122 = vmatpush1.msra.mxu0 0.0
    %123 = vmatprep.subr.mxu0 0.0
    %124 = vmatpush1.msra.mxu0 0.0
    %125 = vmatprep.subr.mxu0 0.0
    %126 = vmatpush1.msra.mxu0 0.0
    %127 = vmatprep.subr.mxu0 0.0
    %128 = vmatpush1.msra.mxu0 0.0
    %129 = vmatprep.subr.mxu0 0.0
    %130 = vmatpush1.msra.mxu0 0.0
    %131 = vmatprep.subr.mxu0 0.0
    %132 = vmatpush1.msra.mxu0 0.0
    %133 = vmatprep.subr.mxu0 0.0
    %134 = vmatpush1.msra.mxu0 0.0
    %135 = vmatprep.subr.mxu0 0.0
    %136 = vmatpush1.msra.mxu0 0.0
    %137 = vmatprep.subr.mxu0 0.0
    %138 = vmatpush1.msra.mxu0 0.0
    %139 = vmatprep.subr.mxu0 0.0
    %140 = vmatpush1.msra.mxu0 0.0
    %141 = vmatprep.subr.mxu0 0.0
    %142 = vmatpush1.msra.mxu0 0.0
    %143 = vmatprep.subr.mxu0 0.0
    %144 = vmatpush1.msra.mxu0 0.0
    %145 = vmatprep.subr.mxu0 0.0
    %146 = vmatpush1.msra.mxu0 0.0
    %147 = vmatprep.subr.mxu0 0.0
    %148 = vmatpush1.msra.mxu0 0.0
    %149 = vmatprep.subr.mxu0 0.0
    %150 = vmatpush1.msra.mxu0 0.0
    %151 = vmatprep.subr.mxu0 0.0
    %152 = vmatpush1.msra.mxu0 0.0
    %153 = vmatprep.mubr.f32.mxu0 0.0
    %154 = vmatmul.mubr.f32.gmra.mrb[0].mxu0 %v44
    %v155 = vpop.f32.mrb[0].mxu0
    %v156 = vadd.f32 %v82, %v155
    %v157 = vpop.f32.mrb[0].mxu0
    %v158 = vadd.f32 %v86, %v157
    %159 = vdwg.mxu0
    %s160 = sld [smem:[#allocation2]]
    %s161 = sld [smem:[#allocation2 + $0x1]]
    %v162 = vstv %s160
    %v163 = vmax.f32 %v156, %v162
    %v164 = vmax.f32 %v158, %v162
    %v165 = vstv %s161
    %v166 = vmin.f32 %v163, %v165
    %v167 = vmin.f32 %v164, %v165
    %v170 = vcombine.low %v166, %v167
    %v172 = vunpack.c.l.s4 1966171168
    %v173 = vunpack.c.0.s8 %v172
    %v174 = vlaneseq
    %v175 = vshrl.u32 %v174, 7
    %v176 = vsub.s32 %v173, %v175
    %v177 = vrot.slane %v170, %v176
    %v179 = vunpack.c.l.s4 1966171168
    %v180 = vunpack.c.0.s8 %v179
    %v181 = vlaneseq
    %v182 = vshrl.u32 %v181, 7
    %v183 = vsub.s32 %v180, %v182
    %v184 = vrot.slane %v177, %v183
    %v186 = vlaneseq
    %vm187 = vcmp.ge.s32.totalorder %v186, 0
    %vm188 = vcmp.lt.s32.totalorder %v186, 256
    %vm189 = vmand %vm187, %vm188
    %190 = vst.msk [vmem:[%s4] sm:$0x3] %vm189, %v184
    // Predicated region
    $region26: #{model_forward.1} parent=1 // pred_check
      _
    $region27: #{model_forward.1} parent=1 // pred_check_branch
      %192 = sbr.rel (0) target = $region29
    $region28: #{model_forward.1} parent=1 // pred_region
      _
    $region29: #{model_forward.1} parent=1 // pred_fallthru
      _
    // Predicated region
    $region30: #{model_forward.1} parent=1 // pred_check
      _
    $region31: #{model_forward.1} parent=1 // pred_check_branch
      %194 = sbr.rel (0) target = $region33
    $region32: #{model_forward.1} parent=1 // pred_region
      _
    $region33: #{model_forward.1} parent=1 // pred_fallthru
      _
    %195 = vsyncpa [#allocation3], 1
    %196 = vsyncpa [#allocation4], 1

</llo_original>
